<compile_context>
chip_gen: v6e
topology: v6e:2x2x1
jax: 0.10.0
libtpu: 0.0.40
codegen_flags: <defaults>
</compile_context>

<pallas_src>
import functools

import jax
import jax.numpy as jnp
from jax.experimental import pallas as pl
from jax.experimental.pallas import tpu as pltpu


def _round_up(x: int, m: int) -> int:
    return ((x + m - 1) // m) * m


# ----------------------------- kernels ------------------------------------ #

def _msa_proj_kernel(sf_ref, w_ref, b_ref, m_ref):
    """m = sf @ W_m + b_m for one (1, TI, S_pad) row tile."""
    m_ref[0] = (jnp.dot(sf_ref[0], w_ref[...],
                        preferred_element_type=jnp.float32) + b_ref[...])


def _pair_kernel(ri_i_ref, ri_j_ref, sf_i_ref, sf_j_ref,
                 wi_ref, bi_ref, wj_ref, bj_ref, wrel_ref, brel_ref,
                 z_ref, *, relpos_k):
    """One (TI, TJ) tile of the pair embedding, stored lane-dense as
    (TI, TJ*c_z):  z[i, j] = relpos(i, j) + emb_i[i] + emb_j[j]."""
    ti = sf_i_ref.shape[1]
    tj = sf_j_ref.shape[1]
    c_z = wi_ref.shape[1]
    k_pad = wrel_ref.shape[0]

    # Row / column projections of the target features.  K (= padded seq_dim)
    # is tiny, so recomputing per tile beats an HBM roundtrip of two
    # (B, N, c_z) intermediates.
    ei = (jnp.dot(sf_i_ref[0], wi_ref[...],
                  preferred_element_type=jnp.float32) + bi_ref[...])   # (ti, c_z)
    ej = (jnp.dot(sf_j_ref[0], wj_ref[...],
                  preferred_element_type=jnp.float32) + bj_ref[...])   # (tj, c_z)

    # Relative-position bin index.  torch.argmin(|d - bins|) with
    # first-tie-wins == clip(ceil(d - 0.5), -k, k) + k  (exact for integer
    # residue indices; exact as long as |d| is f32-representable).
    ri_i = ri_i_ref[0]                                   # (ti, 1)
    ri_j = ri_j_ref[0, :, 0]                             # (tj,)
    d = ri_i - ri_j[None, :]                             # (ti, tj)
    kf = jnp.float32(relpos_k)
    idx = jnp.clip(jnp.ceil(d - 0.5), -kf, kf) + kf      # values in [0, 2k]

    # 2-D lane-aligned one-hot: (ti*tj, k_pad) with k_pad a multiple of 128,
    # contracted on the MXU against the zero-padded relpos weight.
    idx_flat = idx.reshape(ti * tj, 1)
    bins = jax.lax.broadcasted_iota(jnp.float32, (ti * tj, k_pad), 1)
    onehot = (bins == idx_flat).astype(jnp.float32)
    zrel = (jnp.dot(onehot, wrel_ref[...],
                    preferred_element_type=jnp.float32)
            + brel_ref[...])                             # (ti*tj, c_z)

    # Lane-dense store: out[i, j*c_z + c] = zrel[i*tj + j, c] + ei[i, c] + ej[j, c]
    z_ref[0] = (zrel.reshape(ti, tj * c_z)
                + jnp.tile(ei, (1, tj))
                + ej.reshape(1, tj * c_z))


# ------------------------- tiling / VMEM heuristics ------------------------ #

def _pick_tile(n, target, ok):
    """Largest divisor of n that is <= target and satisfies `ok`; n otherwise."""
    if n <= target:
        return n
    for t in range(target, 0, -1):
        if n % t == 0 and ok(t):
            return t
    return n


def _pair_tile_vmem(ti, tj, c_z, s_pad, k_pad):
    """Rough f32 VMEM footprint of one pair-kernel grid step (bytes)."""
    f = 4
    z_out = 2 * ti * tj * c_z * f                   # double-buffered output tile
    onehot = ti * tj * k_pad * f
    zrel = 2 * ti * tj * c_z * f                    # zrel + broadcast temporaries
    misc = 4 * ti * tj * f                          # d / idx / flatten temps
    sf_tiles = 2 * (ti + tj) * s_pad * f
    emb = (ti + tj) * c_z * f
    weights = 2 * (2 * s_pad * c_z + k_pad * c_z + 3 * c_z) * f
    return z_out + onehot + zrel + misc + sf_tiles + emb + weights


# ----------------------------- wrapper ------------------------------------ #

class RelativePositionEmbedding:
    def __init__(self, c_m: int, c_z: int, seq_dim: int = 22,
                 relpos_k: int = 32, key=None):
        self.c_m = c_m
        self.c_z = c_z
        self.seq_dim = seq_dim
        self.relpos_k = relpos_k
        self.num_bins = 2 * relpos_k + 1
        # MXU / lane-friendly padded sizes (zero-padded -> numerically exact).
        self.s_pad = _round_up(seq_dim, 8)
        self.k_pad = _round_up(self.num_bins, 128)

        if key is None:
            key = jax.random.PRNGKey(0)
        ks = jax.random.split(key, 8)
        init = lambda k, shape: (0.02 * jax.random.normal(k, shape)).astype(jnp.float32)
        # weights stored as (in, out) == torch Linear weight transposed
        self.w_tf_z_i = init(ks[0], (seq_dim, c_z))
        self.b_tf_z_i = init(ks[1], (1, c_z))
        self.w_tf_z_j = init(ks[2], (seq_dim, c_z))
        self.b_tf_z_j = init(ks[3], (1, c_z))
        self.w_tf_m = init(ks[4], (seq_dim, c_m))
        self.b_tf_m = init(ks[5], (1, c_m))
        self.w_relpos = init(ks[6], (self.num_bins, c_z))
        self.b_relpos = init(ks[7], (1, c_z))

        pad_rows = lambda w, rows: jnp.pad(w, ((0, rows - w.shape[0]), (0, 0)))
        self.w_tf_z_i_p = pad_rows(self.w_tf_z_i, self.s_pad)
        self.w_tf_z_j_p = pad_rows(self.w_tf_z_j, self.s_pad)
        self.w_tf_m_p = pad_rows(self.w_tf_m, self.s_pad)
        self.w_relpos_p = pad_rows(self.w_relpos, self.k_pad)

    def __call__(self, target_feat, residue_index=None):
        sf = target_feat.astype(jnp.float32)
        B, N, S = sf.shape
        assert S == self.seq_dim
        c_z, c_m = self.c_z, self.c_m
        s_pad, k_pad = self.s_pad, self.k_pad

        if residue_index is None:
            ri = jnp.broadcast_to(jnp.arange(N, dtype=sf.dtype)[None], (B, N))
        else:
            ri = residue_index.astype(sf.dtype)

        # glue: zero-pad the feature dim and lay residue_index out as (B, N, 1)
        # so its tiles (TI, 1)/(TJ, 1) satisfy the (8, 128) blocking rules.
        sf_p = jnp.pad(sf, ((0, 0), (0, 0), (0, s_pad - S)))
        ri_col = ri[..., None]                                  # (B, N, 1)

        # ---- generation-aware pair-tile sizing (VMEM-budget driven) ---------
        try:
            vmem = int(getattr(pltpu.get_tpu_info(), "vmem_capacity_bytes",
                               64 * 1024 * 1024))
        except Exception:
            vmem = 64 * 1024 * 1024        # conservative default: v7x = 64 MiB/TC
        budget = vmem // 3                 # headroom for pipelining & misc

        ok_i = lambda t: t == N or t % 8 == 0
        ok_j = lambda t: t == N or (t % 8 == 0 and (t * c_z) % 128 == 0)
        ti = tj = None
        for tgt in (512, 256, 128, 64, 32, 16, 8):
            cand_i = _pick_tile(N, tgt, ok_i)
            cand_j = _pick_tile(N, tgt, ok_j)
            if _pair_tile_vmem(cand_i, cand_j, c_z, s_pad, k_pad) <= budget:
                ti, tj = cand_i, cand_j
                break
        if ti is None:
            ti = _pick_tile(N, 8, ok_i)
            tj = _pick_tile(N, 8, ok_j)

        est = _pair_tile_vmem(ti, tj, c_z, s_pad, k_pad)
        vmem_limit = None
        if est > 32 * 1024 * 1024:         # above the default scoped limit
            vmem_limit = int(min(est * 3 // 2, vmem * 9 // 10))

        # ---- MSA projection (tiled over rows) -------------------------------
        tim = _pick_tile(N, 512, ok_i)
        m = pl.pallas_call(
            _msa_proj_kernel,
            grid=(B, N // tim),
            in_specs=[
                pl.BlockSpec((1, tim, s_pad), lambda b, i: (b, i, 0)),
                pl.BlockSpec((s_pad, c_m), lambda b, i: (0, 0)),
                pl.BlockSpec((1, c_m), lambda b, i: (0, 0)),
            ],
            out_specs=pl.BlockSpec((1, tim, c_m), lambda b, i: (b, i, 0)),
            out_shape=jax.ShapeDtypeStruct((B, N, c_m), jnp.float32),
            compiler_params=pltpu.CompilerParams(
                dimension_semantics=("parallel", "parallel")),
        )(sf_p, self.w_tf_m_p, self.b_tf_m)

        # ---- pair embedding (tiled NxN grid, lane-dense output) -------------
        pair_kernel = functools.partial(_pair_kernel, relpos_k=self.relpos_k)
        full = lambda shape: pl.BlockSpec(shape, lambda b, i, j: (0,) * len(shape))
        z_flat = pl.pallas_call(
            pair_kernel,
            grid=(B, N // ti, N // tj),
            in_specs=[
                pl.BlockSpec((1, ti, 1), lambda b, i, j: (b, i, 0)),      # ri rows
                pl.BlockSpec((1, tj, 1), lambda b, i, j: (b, j, 0)),      # ri cols
                pl.BlockSpec((1, ti, s_pad), lambda b, i, j: (b, i, 0)),  # sf rows
                pl.BlockSpec((1, tj, s_pad), lambda b, i, j: (b, j, 0)),  # sf cols
                full((s_pad, c_z)), full((1, c_z)),                       # W_i, b_i
                full((s_pad, c_z)), full((1, c_z)),                       # W_j, b_j
                full((k_pad, c_z)), full((1, c_z)),                       # W_rel, b_rel
            ],
            out_specs=pl.BlockSpec((1, ti, tj * c_z), lambda b, i, j: (b, i, j)),
            out_shape=jax.ShapeDtypeStruct((B, N, N * c_z), jnp.float32),
            compiler_params=pltpu.CompilerParams(
                dimension_semantics=("parallel", "parallel", "parallel"),
                vmem_limit_bytes=vmem_limit),
        )(ri_col, ri_col, sf_p, sf_p,
          self.w_tf_z_i_p, self.b_tf_z_i,
          self.w_tf_z_j_p, self.b_tf_z_j,
          self.w_relpos_p, self.b_relpos)

        z = z_flat.reshape(B, N, N, c_z)
        # unsqueeze(-3): [B, N, c_m] -> [B, 1, N, c_m]   (glue, plain JAX)
        return m[:, None, :, :], z

    # Pure-JAX reference for verification.
    def reference(self, target_feat, residue_index=None):
        sf = target_feat.astype(jnp.float32)
        B, N, _ = sf.shape
        if residue_index is None:
            ri = jnp.broadcast_to(jnp.arange(N, dtype=sf.dtype)[None], (B, N))
        else:
            ri = residue_index.astype(sf.dtype)
        ei = sf @ self.w_tf_z_i + self.b_tf_z_i
        ej = sf @ self.w_tf_z_j + self.b_tf_z_j
        m = (sf @ self.w_tf_m + self.b_tf_m)[:, None]
        d = ri[..., :, None] - ri[..., None, :]
        bins = jnp.arange(-self.relpos_k, self.relpos_k + 1, dtype=sf.dtype)
        idx = jnp.argmin(jnp.abs(d[..., None] - bins), axis=-1)
        onehot = jax.nn.one_hot(idx, self.num_bins, dtype=sf.dtype)
        z = onehot @ self.w_relpos + self.b_relpos
        z = z + ei[..., :, None, :] + ej[..., None, :, :]
        return m, z


# ------------------------------- main -------------------------------------- #

if __name__ == "__main__":
    key = jax.random.PRNGKey(0)
    k_param, k_sf = jax.random.split(key)

    B, N = 2, 8
    seq_dim, c_m, c_z, relpos_k = 22, 16, 32, 4

    module = RelativePositionEmbedding(c_m=c_m, c_z=c_z, seq_dim=seq_dim,
                                       relpos_k=relpos_k, key=k_param)

    target_feat = jax.random.normal(k_sf, (B, N, seq_dim), dtype=jnp.float32)

    m, z = module(target_feat)          # residue_index defaults to arange
    m, z = jax.block_until_ready((m, z))

    m_ref, z_ref = module.reference(target_feat)
    assert m.shape == (B, 1, N, c_m) and z.shape == (B, N, N, c_z)
    assert jnp.allclose(m, m_ref, atol=1e-5, rtol=1e-5)
    assert jnp.allclose(z, z_ref, atol=1e-5, rtol=1e-5)

    print("KERNEL_OK")
</pallas_src>

<mosaic_0001>
module attributes {stable_mosaic.version = 11 : i64} {
  func.func @_msa_proj_kernel(%arg0: i32, %arg1: i32, %arg2: memref<1x8x24xf32, #tpu.memory_space<vmem>>, %arg3: memref<24x16xf32, #tpu.memory_space<vmem>>, %arg4: memref<1x16xf32, #tpu.memory_space<vmem>>, %arg5: memref<1x8x16xf32, #tpu.memory_space<vmem>>) attributes {dimension_semantics = [#tpu.dimension_semantics<parallel>, #tpu.dimension_semantics<parallel>], iteration_bounds = array<i64: 2, 1>, scalar_prefetch = 0 : i64, scratch_operands = 0 : i64, tpu.core_type = #tpu.core_type<tc>, window_params = [{transform_indices = @transform_0, window_bounds = array<i64: 1, 8, 24>}, {pipeline_mode = #tpu.pipeline_mode<synchronous>, transform_indices = @transform_1, window_bounds = array<i64: 24, 16>}, {pipeline_mode = #tpu.pipeline_mode<synchronous>, transform_indices = @transform_2, window_bounds = array<i64: 1, 16>}, {transform_indices = @transform_3, window_bounds = array<i64: 1, 8, 16>}]} {
    %c0 = arith.constant 0 : index
    %c0_0 = arith.constant 0 : index
    %c0_1 = arith.constant 0 : index
    %0 = vector.load %arg2[%c0, %c0_0, %c0_1] : memref<1x8x24xf32, #tpu.memory_space<vmem>>, vector<1x8x24xf32>
    %1 = vector.shape_cast %0 : vector<1x8x24xf32> to vector<8x24xf32>
    %c0_2 = arith.constant 0 : index
    %c0_3 = arith.constant 0 : index
    %2 = vector.load %arg3[%c0_2, %c0_3] : memref<24x16xf32, #tpu.memory_space<vmem>>, vector<24x16xf32>
    %cst = arith.constant dense<0.000000e+00> : vector<8x16xf32>
    %3 = tpu.matmul %1, %2, %cst {dimension_numbers = #tpu.dot_dimension_numbers<[1], [0], [0], [1], [0, 0, 1, 1], [], []>} : vector<8x24xf32>, vector<24x16xf32>, vector<8x16xf32> -> vector<8x16xf32>
    %c0_4 = arith.constant 0 : index
    %c0_5 = arith.constant 0 : index
    %4 = vector.load %arg4[%c0_4, %c0_5] : memref<1x16xf32, #tpu.memory_space<vmem>>, vector<1x16xf32>
    %5 = vector.broadcast %4 : vector<1x16xf32> to vector<8x16xf32>
    %6 = arith.addf %3, %5 : vector<8x16xf32>
    %c0_6 = arith.constant 0 : index
    %c0_7 = arith.constant 0 : index
    %c0_8 = arith.constant 0 : index
    %7 = vector.load %arg5[%c0_6, %c0_7, %c0_8] : memref<1x8x16xf32, #tpu.memory_space<vmem>>, vector<1x8x16xf32>
    %8 = vector.shape_cast %7 : vector<1x8x16xf32> to vector<8x16xf32>
    %9 = vector.shape_cast %6 : vector<8x16xf32> to vector<1x8x16xf32>
    tpu.vector_store %arg5[%c0_6, %c0_7, %c0_8], %9 {strides = array<i32>} : memref<1x8x16xf32, #tpu.memory_space<vmem>>, vector<1x8x16xf32>,
    return
  }
  func.func @transform_0(%arg0: i32, %arg1: i32) -> (i32, i32, i32) {
    %c0_i32 = arith.constant 0 : i32
    %c0_i32_0 = arith.constant 0 : i32
    return %arg0, %arg1, %c0_i32 : i32, i32, i32
  }
  func.func @transform_1(%arg0: i32, %arg1: i32) -> (i32, i32) {
    %c0_i32 = arith.constant 0 : i32
    %c0_i32_0 = arith.constant 0 : i32
    %c0_i32_1 = arith.constant 0 : i32
    return %c0_i32, %c0_i32_0 : i32, i32
  }
  func.func @transform_2(%arg0: i32, %arg1: i32) -> (i32, i32) {
    %c0_i32 = arith.constant 0 : i32
    %c0_i32_0 = arith.constant 0 : i32
    %c0_i32_1 = arith.constant 0 : i32
    return %c0_i32, %c0_i32_0 : i32, i32
  }
  func.func @transform_3(%arg0: i32, %arg1: i32) -> (i32, i32, i32) {
    %c0_i32 = arith.constant 0 : i32
    %c0_i32_0 = arith.constant 0 : i32
    return %arg0, %arg1, %c0_i32 : i32, i32, i32
  }
}

</mosaic_0001>

<llo_original>
// kernel: tpu_custom_call.1
$region0: #{tpu_custom_call.1}
  #allocation0 [shape = 'u32[]', space=smem, size = 0x4, offset = 0x4, fixed_abs, tag = 'smem constant byte address 0x4 - core index']
  #allocation1 [shape = 'u32[144,128]{1,0:T(1,128)}', space=vmem, size = 0x12000, scoped, tag = 'internal scratch']
  %s0 = inlined_call_operand.vmem [shape: f32[2,8,24], index: 0, kind: input, shape index: {}]
  %s1 = inlined_call_operand.vmem [shape: f32[24,16], index: 1, kind: input, shape index: {}]
  %s2 = inlined_call_operand.vmem [shape: f32[1,16], index: 2, kind: input, shape index: {}]
  %s3 = inlined_call_operand.hbm [shape: f32[2,8,16], index: 3, kind: output, shape index: {}]
  %s4 = sld [smem:[#allocation0]]
  $region45: #{tpu_custom_call.1} parent=0
    _
  %s6 = ssub.s32 1, %s4
  %s7 = scalar_select 0, %s6, %s4
  $region1: #{tpu_custom_call.1} parent=0
    #allocation2 [shape = 'u8[8192]{0}', space=vmem, size = 0x2000, scoped, tag = 'output window, operand 0']
    #allocation3 [shape = 's32[2]{0}', space=sflag, size = 0x8, scoped, tag = 'scoped memory for tpu_custom_call.1']
    %8 = vsyncpa [#allocation3], 0
    %s9 = scalar_lea.sflag [#allocation3], 1
    %10 = vsyncpa %s9, 0
    loop: start=0, step=1, limit=4
    $region2: #{tpu_custom_call.1} parent=1 // loop_pre_header
      _
    $region3: #{tpu_custom_call.1} parent=1 // loop_header
      %s12 = sphi 0, %s16
      %p13 = scmp.ge.s32.totalorder %s12, 4
      %s19 = sphi 0, %s31
      %s20 = sphi 0, %s27
      %s21 = sphi 0, %s19
      %s22 = sphi 0, %s20
      %s23 = sphi 0, %s21
      %s24 = sphi 0, %s22
      %s36 = sphi 0, %s38
      %s39 = sphi 0, %s36
      %s40 = sphi 0, %s39
      %s56 = sphi 0, %s40
      %s60 = sphi 0, %s60
      %s62 = sphi 0, %s60
      %s63 = sphi 0, %s62
      %s77 = sphi 0, %s63
      %s81 = sphi 0, %s81
      %s83 = sphi 0, %s81
      %s84 = sphi 0, %s83
      %s98 = sphi 0, %s84
      %s106 = sphi 0, %s108
      %s109 = sphi 0, %s106
      %s110 = sphi 0, %s109
      %s126 = sphi 0, %s110
    $region4: #{tpu_custom_call.1} parent=1 // loop_header_branch
      %15 = sbr.rel (%p13) target = $region8
    $region5: #{tpu_custom_call.1} parent=1 // loop_body
      %s17 = ssub.s32 %s12, 1
      %s18 = ssub.s32 %s12, 2
      %s25 = sadd.s32 1, %s20
      %p26 = scmp.ge.s32.totalorder %s25, 1
      %s27 = scalar_select %p26, 0, %s25
      %s28 = sadd.s32 1, %s19
      %s29 = scalar_select %p26, %s28, %s19
      %p30 = scmp.ge.s32.totalorder %s29, 2
      %s31 = scalar_select %p30, 0, %s29
      %s32 = ssub.s32 %s19, %s31
      %s33 = ssub.s32 %s20, %s27
      %s34 = sor.u32 %s32, %s33
      %p35 = scmp.eq.s32.totalorder %s34, 0
      %s37 = sadd.s32 %s36, 1
      %s38 = scalar_select %p35, %s36, %s37
      %p41 = pneg %p35
      %p42 = scmp.eq.s32.totalorder %s12, 1
      %p43 = por %p41, %p42
      %p44 = scmp.ne.s32.totalorder %s36, %s39
      %p45 = scmp.eq.s32.totalorder %s12, 0
      %p46 = por %p44, %p45
      %p47 = scmp.ne.s32.totalorder %s36, %s39
      %p48 = scmp.eq.s32.totalorder %s17, 1
      %p49 = por %p47, %p48
      %p50 = scmp.ne.s32.totalorder %s39, %s40
      %p51 = scmp.eq.s32.totalorder %s17, 0
      %p52 = por %p50, %p51
      %p53 = scmp.ne.s32.totalorder %s39, %s40
      %p54 = scmp.eq.s32.totalorder %s18, 1
      %p55 = por %p53, %p54
      %p57 = scmp.ne.s32.totalorder %s40, %s56
      %p58 = scmp.eq.s32.totalorder %s18, 0
      %p59 = por %p57, %p58
      %s61 = sadd.s32 %s60, 1
      %p64 = scmp.eq.s32.totalorder %s12, 1
      %p65 = scmp.ne.s32.totalorder %s60, %s62
      %p66 = scmp.eq.s32.totalorder %s12, 0
      %p67 = por %p65, %p66
      %p68 = scmp.ne.s32.totalorder %s60, %s62
      %p69 = scmp.eq.s32.totalorder %s17, 1
      %p70 = por %p68, %p69
      %p71 = scmp.ne.s32.totalorder %s62, %s63
      %p72 = scmp.eq.s32.totalorder %s17, 0
      %p73 = por %p71, %p72
      %p74 = scmp.ne.s32.totalorder %s62, %s63
      %p75 = scmp.eq.s32.totalorder %s18, 1
      %p76 = por %p74, %p75
      %p78 = scmp.ne.s32.totalorder %s63, %s77
      %p79 = scmp.eq.s32.totalorder %s18, 0
      %p80 = por %p78, %p79
      %s82 = sadd.s32 %s81, 1
      %p85 = scmp.eq.s32.totalorder %s12, 1
      %p86 = scmp.ne.s32.totalorder %s81, %s83
      %p87 = scmp.eq.s32.totalorder %s12, 0
      %p88 = por %p86, %p87
      %p89 = scmp.ne.s32.totalorder %s81, %s83
      %p90 = scmp.eq.s32.totalorder %s17, 1
      %p91 = por %p89, %p90
      %p92 = scmp.ne.s32.totalorder %s83, %s84
      %p93 = scmp.eq.s32.totalorder %s17, 0
      %p94 = por %p92, %p93
      %p95 = scmp.ne.s32.totalorder %s83, %s84
      %p96 = scmp.eq.s32.totalorder %s18, 1
      %p97 = por %p95, %p96
      %p99 = scmp.ne.s32.totalorder %s84, %s98
      %p100 = scmp.eq.s32.totalorder %s18, 0
      %p101 = por %p99, %p100
      %s102 = ssub.s32 %s19, %s31
      %s103 = ssub.s32 %s20, %s27
      %s104 = sor.u32 %s102, %s103
      %p105 = scmp.eq.s32.totalorder %s104, 0
      %s107 = sadd.s32 %s106, 1
      %s108 = scalar_select %p105, %s106, %s107
      %p111 = pneg %p105
      %p112 = scmp.eq.s32.totalorder %s12, 1
      %p113 = por %p111, %p112
      %p114 = scmp.ne.s32.totalorder %s106, %s109
      %p115 = scmp.eq.s32.totalorder %s12, 0
      %p116 = por %p114, %p115
      %p117 = scmp.ne.s32.totalorder %s106, %s109
      %p118 = scmp.eq.s32.totalorder %s17, 1
      %p119 = por %p117, %p118
      %p120 = scmp.ne.s32.totalorder %s109, %s110
      %p121 = scmp.eq.s32.totalorder %s17, 0
      %p122 = por %p120, %p121
      %p123 = scmp.ne.s32.totalorder %s109, %s110
      %p124 = scmp.eq.s32.totalorder %s18, 1
      %p125 = por %p123, %p124
      %p127 = scmp.ne.s32.totalorder %s110, %s126
      %p128 = scmp.eq.s32.totalorder %s18, 0
      %p129 = por %p127, %p128
      %p130 = scmp.le.s32.totalorder 1, %s12
      %p131 = scmp.lt.s32.totalorder %s12, 3
      %p132 = pnand %p130, %p131
      %p133 = pneg %p132
      // Predicated region
      $region9: #{tpu_custom_call.1} parent=5 // pred_check
        _
      $region10: #{tpu_custom_call.1} parent=5 // pred_check_branch
        %135 = sbr.rel (%p132) target = $region12
      $region11: #{tpu_custom_call.1} parent=5 // pred_region
        %s136 = ssub.s32 %s12, 1
        // Predicated region
        $region13: #{tpu_custom_call.1} parent=11 // pred_check
          %p137 = pneg %p73
        $region14: #{tpu_custom_call.1} parent=11 // pred_check_branch
          %139 = sbr.rel (%p137) target = $region16
        $region15: #{tpu_custom_call.1} parent=11 // pred_region
          _
        $region16: #{tpu_custom_call.1} parent=11 // pred_fallthru
          _
        // Predicated region
        $region17: #{tpu_custom_call.1} parent=11 // pred_check
          %p140 = pneg %p94
        $region18: #{tpu_custom_call.1} parent=11 // pred_check_branch
          %142 = sbr.rel (%p140) target = $region20
        $region19: #{tpu_custom_call.1} parent=11 // pred_region
          _
        $region20: #{tpu_custom_call.1} parent=11 // pred_fallthru
          _
      $region12: #{tpu_custom_call.1} parent=5 // pred_fallthru
        _
      %p143 = scmp.lt.s32.totalorder %s12, 2
      // Predicated region
      $region21: #{tpu_custom_call.1} parent=5 // pred_check
        %p144 = pneg %p143
      $region22: #{tpu_custom_call.1} parent=5 // pred_check_branch
        %146 = sbr.rel (%p144) target = $region24
      $region23: #{tpu_custom_call.1} parent=5 // pred_region
        // Predicated region
        $region25: #{tpu_custom_call.1} parent=23 // pred_check
          %p147 = pneg %p46
        $region26: #{tpu_custom_call.1} parent=23 // pred_check_branch
          %149 = sbr.rel (%p147) target = $region28
        $region27: #{tpu_custom_call.1} parent=23 // pred_region
          %p150 = scmp.lt.s32.totalorder %s19, 1
          %s151 = scalar_select %p150, %s19, 1
          %p152 = scmp.lt.s32.totalorder %s20, 0
          %s153 = scalar_select %p152, %s20, 0
          %s154 = sadd.s32 %s153, %s151
          %s155 = smul.addr %s154, 8
          %s156 = scalar_lea.vmem %s0, %s155
        $region28: #{tpu_custom_call.1} parent=23 // pred_fallthru
          _
      $region24: #{tpu_custom_call.1} parent=5 // pred_fallthru
        _
      %p157 = scmp.le.s32.totalorder 1, %s12
      %p158 = scmp.lt.s32.totalorder %s12, 3
      %p159 = pnand %p157, %p158
      %p160 = pneg %p159
      // Predicated region
      $region29: #{tpu_custom_call.1} parent=5 // pred_check
        _
      $region30: #{tpu_custom_call.1} parent=5 // pred_check_branch
        %162 = sbr.rel (%p159) target = $region32
      $region31: #{tpu_custom_call.1} parent=5 // pred_region
        %s163 = ssub.s32 %s12, 1
        %p164 = scmp.lt.s32.totalorder %s21, 1
        %s165 = scalar_select %p164, %s21, 1
        %p166 = scmp.lt.s32.totalorder %s22, 0
        %s167 = scalar_select %p166, %s22, 0
        %s168 = sadd.s32 %s167, %s165
        %s169 = smul.addr %s168, 8
        %s170 = scalar_lea.vmem %s0, %s169
        %p171 = pneg %p52
        %p172 = pneg %p49
        %p173 = pneg %p73
        %p174 = pneg %p70
        %p175 = pneg %p94
        %p176 = pneg %p91
        %p177 = pneg %p122
        %p178 = pneg %p119
        %s179 = sand.u32 %s109, 1
        %s180 = scalar_lea.sflag [#allocation3], %s179
        %s181 = sand.u32 %s109, 1
        %s182 = smul.addr %s181, 8
        %s183 = scalar_lea.vmem [#allocation2], %s182
        %p184 = scmp.lt.s32.totalorder %s21, 1
        %s185 = scalar_select %p184, %s21, 1
        %p186 = scmp.lt.s32.totalorder %s22, 0
        %s187 = scalar_select %p186, %s22, 0
        %s188 = sadd.s32 %s187, %s185
        %s189 = smul.addr %s188, 8
        %s190 = scalar_lea.vmem %s0, %s189
        %v191 = vld [vmem:[%s190] sm:$0xff]
        %v192 = vld [vmem:[%s1] sm:$0xff]
        %v193 = vld [vmem:[%s1 + $0x8] sm:$0xff]
        %v194 = vld [vmem:[%s1 + $0x10] sm:$0xff]
        %v195 = vld [vmem:[%s2] sm:$0x1]
        %v197 = vlaneseq
        %v198 = vshrl.u32 %v197, 7
        %v199 = vsub.s32 0, %v198
        %v200 = vrot.slane %v195, %v199
        %vm202 = vcmask 195584
        %v204 = vsel %vm202, %v191, 0
        %206 = vmatprep.subr.mxu0 0.0
        %207 = vmatpush1.msra.mxu0 0.0
        %208 = vmatprep.subr.mxu0 0.0
        %209 = vmatpush1.msra.mxu0 0.0
        %210 = vmatprep.subr.mxu0 0.0
        %211 = vmatpush1.msra.mxu0 0.0
        %212 = vmatprep.subr.mxu0 0.0
        %213 = vmatpush1.msra.mxu0 0.0
        %214 = vmatprep.subr.mxu0 0.0
        %215 = vmatpush1.msra.mxu0 0.0
        %216 = vmatprep.subr.mxu0 0.0
        %217 = vmatpush1.msra.mxu0 0.0
        %218 = vmatprep.subr.mxu0 0.0
        %219 = vmatpush1.msra.mxu0 0.0
        %220 = vmatprep.subr.mxu0 0.0
        %221 = vmatpush1.msra.mxu0 0.0
        %222 = vmatprep.subr.mxu0 0.0
        %223 = vmatpush1.msra.mxu0 0.0
        %224 = vmatprep.subr.mxu0 0.0
        %225 = vmatpush1.msra.mxu0 0.0
        %226 = vmatprep.subr.mxu0 0.0
        %227 = vmatpush1.msra.mxu0 0.0
        %228 = vmatprep.subr.mxu0 0.0
        %229 = vmatpush1.msra.mxu0 0.0
        %230 = vmatprep.subr.mxu0 0.0
        %231 = vmatpush1.msra.mxu0 0.0
        %232 = vmatprep.subr.mxu0 0.0
        %233 = vmatpush1.msra.mxu0 %v194
        %234 = vmatprep.subr.mxu0 0.0
        %235 = vmatpush1.msra.mxu0 %v193
        %236 = vmatprep.subr.mxu0 0.0
        %237 = vmatpush1.msra.mxu0 %v192
        %238 = vmatprep.subr.mxu0 0.0
        %239 = vmatpush2.msra.mxu0 0.0
        %240 = vmatprep.subr.mxu0 0.0
        %241 = vmatpush2.msra.mxu0 0.0
        %242 = vmatprep.subr.mxu0 0.0
        %243 = vmatpush2.msra.mxu0 0.0
        %244 = vmatprep.subr.mxu0 0.0
        %245 = vmatpush2.msra.mxu0 0.0
        %246 = vmatprep.subr.mxu0 0.0
        %247 = vmatpush2.msra.mxu0 0.0
        %248 = vmatprep.subr.mxu0 0.0
        %249 = vmatpush2.msra.mxu0 0.0
        %250 = vmatprep.subr.mxu0 0.0
        %251 = vmatpush2.msra.mxu0 0.0
        %252 = vmatprep.subr.mxu0 0.0
        %253 = vmatpush2.msra.mxu0 0.0
        %254 = vmatprep.subr.mxu0 0.0
        %255 = vmatpush2.msra.mxu0 0.0
        %256 = vmatprep.subr.mxu0 0.0
        %257 = vmatpush2.msra.mxu0 0.0
        %258 = vmatprep.subr.mxu0 0.0
        %259 = vmatpush2.msra.mxu0 0.0
        %260 = vmatprep.subr.mxu0 0.0
        %261 = vmatpush2.msra.mxu0 0.0
        %262 = vmatprep.subr.mxu0 0.0
        %263 = vmatpush2.msra.mxu0 0.0
        %264 = vmatprep.subr.mxu0 0.0
        %265 = vmatpush2.msra.mxu0 0.0
        %266 = vmatprep.subr.mxu0 0.0
        %267 = vmatpush2.msra.mxu0 0.0
        %268 = vmatprep.subr.mxu0 0.0
        %269 = vmatpush2.msra.mxu0 0.0
        %270 = vmatprep.mubr.f32.mxu0 0.0
        %271 = vmatmul.mubr.f32.gmra.mxu0 %v204
        %v272 = vpop.f32.mrf.mxu0
        %v273 = vadd.f32 %v200, %v272
        %v274 = vpop.f32.mrf.mxu0
        %275 = vdwg.mxu0
        %vm276 = vcmask 130048
        %277 = vst.msk [vmem:[%s183] sm:$0xff] %vm276, %v273
        %s278 = sand.u32 %s109, 1
        %s279 = scalar_lea.sflag [#allocation3], %s278
        %s280 = sand.u32 %s109, 1
        %s281 = smul.addr %s280, 8
        %s282 = scalar_lea.vmem [#allocation2], %s281
        // Predicated region
        $region33: #{tpu_custom_call.1} parent=31 // pred_check
          %p283 = pneg %p119
        $region34: #{tpu_custom_call.1} parent=31 // pred_check_branch
          %285 = sbr.rel (%p283) target = $region36
        $region35: #{tpu_custom_call.1} parent=31 // pred_region
          %s287 = ssub.s32 128, 128
          %288 = vsyncadd %s279, %s287
          %s289 = sadd.s32 %s22, %s21
          %s290 = smul.addr %s289, 128
          %s291 = scalar_lea.hbm %s3, %s290
          %s293 = sshll.u32 %s282, 4
          %s294 = int_to_ptr.vmem [resolvable:$true] %s293
          %296 = dma.vmem_to_hbm [thread:$0]  %s294, 128, %s291, %s279
        $region36: #{tpu_custom_call.1} parent=31 // pred_fallthru
          _
      $region32: #{tpu_custom_call.1} parent=5 // pred_fallthru
        _
      %p297 = scmp.le.s32.totalorder 2, %s12
      // Predicated region
      $region37: #{tpu_custom_call.1} parent=5 // pred_check
        %p298 = pneg %p297
      $region38: #{tpu_custom_call.1} parent=5 // pred_check_branch
        %300 = sbr.rel (%p298) target = $region40
      $region39: #{tpu_custom_call.1} parent=5 // pred_region
        %s301 = ssub.s32 %s12, 2
        // Predicated region
        $region41: #{tpu_custom_call.1} parent=39 // pred_check
          %p302 = pneg %p125
        $region42: #{tpu_custom_call.1} parent=39 // pred_check_branch
          %304 = sbr.rel (%p302) target = $region44
        $region43: #{tpu_custom_call.1} parent=39 // pred_region
          %s305 = sand.u32 %s110, 1
          %s306 = scalar_lea.sflag [#allocation3], %s305
          %s307 = sand.u32 %s110, 1
          %s308 = smul.addr %s307, 8
          %s309 = scalar_lea.vmem [#allocation2], %s308
          %310 = dma.done %s306, 128
        $region44: #{tpu_custom_call.1} parent=39 // pred_fallthru
          _
      $region40: #{tpu_custom_call.1} parent=5 // pred_fallthru
        _
    $region6: #{tpu_custom_call.1} parent=1 // loop_footer
      %s16 = sadd.s32 1, %s12
    $region7: #{tpu_custom_call.1} parent=1 // loop_footer_branch
      %11 = sbr.rel target = $region3
    $region8: #{tpu_custom_call.1} parent=1 // loop_exit
      _
    %311 = vsyncpa [#allocation3], 1
    %s312 = scalar_lea.sflag [#allocation3], 1
    %313 = vsyncpa %s312, 1

</llo_original>
